<compile_context>
chip_gen: v7x
topology: tpu7x:2x2x1
jax: 0.10.0
libtpu: 0.0.40
codegen_flags: <defaults>
</compile_context>

<pallas_src>
import functools

import jax
import jax.numpy as jnp
from jax.experimental import pallas as pl
from jax.experimental.pallas import tpu as pltpu


def _round_up(x, m):
    return ((x + m - 1) // m) * m


# -----------------------------------------------------------------------------
# Tiled fused matmul (+ bias + activation) kernel
# -----------------------------------------------------------------------------
def _matmul_kernel(a_ref, b_ref, bias_ref, o_ref, acc_ref, *, activation):
    @pl.when(pl.program_id(2) == 0)
    def _():
        acc_ref[...] = jnp.zeros_like(acc_ref)

    acc_ref[...] += jnp.dot(a_ref[...], b_ref[...],
                            preferred_element_type=jnp.float32)

    @pl.when(pl.program_id(2) == pl.num_programs(2) - 1)
    def _():
        acc = acc_ref[...] + bias_ref[...]
        if activation == "relu":
            acc = jnp.maximum(acc, 0.0)
        elif activation == "tanh":
            acc = jnp.tanh(acc)
        o_ref[...] = acc.astype(o_ref.dtype)


def pallas_matmul(a, b, bias, activation="none", tm=128, tn=128, tk=128,
                  mxu_dtype=jnp.bfloat16):
    M, K = a.shape
    _, N = b.shape
    Mp, Kp, Np = _round_up(M, tm), _round_up(K, tk), _round_up(N, tn)
    a_p = jnp.pad(a.astype(mxu_dtype), ((0, Mp - M), (0, Kp - K)))
    b_p = jnp.pad(b.astype(mxu_dtype), ((0, Kp - K), (0, Np - N)))
    bias_p = jnp.pad(bias.astype(jnp.float32).reshape(1, N), ((0, 0), (0, Np - N)))
    out = pl.pallas_call(
        functools.partial(_matmul_kernel, activation=activation),
        out_shape=jax.ShapeDtypeStruct((Mp, Np), jnp.float32),
        grid=(Mp // tm, Np // tn, Kp // tk),
        in_specs=[
            pl.BlockSpec((tm, tk), lambda i, j, k: (i, k)),
            pl.BlockSpec((tk, tn), lambda i, j, k: (k, j)),
            pl.BlockSpec((1, tn), lambda i, j, k: (0, j)),
        ],
        out_specs=pl.BlockSpec((tm, tn), lambda i, j, k: (i, j)),
        scratch_shapes=[pltpu.VMEM((tm, tn), jnp.float32)],
        compiler_params=pltpu.CompilerParams(
            dimension_semantics=("parallel", "parallel", "arbitrary")),
    )(a_p, b_p, bias_p)
    return out[:M, :N]


# -----------------------------------------------------------------------------
# Conv1d with in-kernel K-tap accumulation (channels-last, 'same' padding)
# -----------------------------------------------------------------------------
def _conv1d_kernel(x_ref, w_ref, b_ref, o_ref, *, ksize, activation):
    T = o_ref.shape[1]
    acc = jnp.zeros(o_ref.shape[1:], jnp.float32)           # (T, C_out)
    for k in range(ksize):
        acc = acc + jnp.dot(x_ref[0, k:k + T, :], w_ref[k],
                            preferred_element_type=jnp.float32)
    acc = acc + b_ref[...]
    if activation == "relu":
        acc = jnp.maximum(acc, 0.0)
    elif activation == "tanh":
        acc = jnp.tanh(acc)
    o_ref[0] = acc


def conv1d(x, w, b, activation="none", mxu_dtype=jnp.bfloat16):
    # x: (B, T, C_in) channels-last; w: (C_out, C_in, K) PyTorch layout; 'same' pad.
    B, T, C_in = x.shape
    C_out, _, K = w.shape
    pad = (K - 1) // 2
    xp = jnp.pad(x.astype(mxu_dtype), ((0, 0), (pad, pad), (0, 0)))
    w_taps = jnp.transpose(w, (2, 1, 0)).astype(mxu_dtype)   # (K, C_in, C_out)
    bias = b.reshape(1, C_out).astype(jnp.float32)
    Tp = T + 2 * pad
    return pl.pallas_call(
        functools.partial(_conv1d_kernel, ksize=K, activation=activation),
        out_shape=jax.ShapeDtypeStruct((B, T, C_out), jnp.float32),
        grid=(B,),
        in_specs=[
            pl.BlockSpec((1, Tp, C_in), lambda bi: (bi, 0, 0)),
            pl.BlockSpec((K, C_in, C_out), lambda bi: (0, 0, 0)),
            pl.BlockSpec((1, C_out), lambda bi: (0, 0)),
        ],
        out_specs=pl.BlockSpec((1, T, C_out), lambda bi: (bi, 0, 0)),
        compiler_params=pltpu.CompilerParams(dimension_semantics=("parallel",)),
    )(xp, w_taps, bias)


# -----------------------------------------------------------------------------
# Fused bidirectional LSTM recurrence.  The X @ W_ih gates are precomputed outside
# (one tiled matmul over all timesteps); only h @ W_hh lives in the serial loop.
# gx: (T, 2, B, 4H) precomputed gates (fwd at [:,0], time-reversed bwd at [:,1]);
# whh: (2, H, 4H).
# -----------------------------------------------------------------------------
def _bilstm_kernel(gx_ref, whh_ref, h_out_ref, h_s, c_s):
    t = pl.program_id(0)

    @pl.when(t == 0)
    def _():
        h_s[...] = jnp.zeros_like(h_s)
        c_s[...] = jnp.zeros_like(c_s)

    H = h_s.shape[-1]
    gates = gx_ref[0] + jnp.einsum("dbh,dhg->dbg", h_s[...], whh_ref[...],
                                   preferred_element_type=jnp.float32)
    i = jax.nn.sigmoid(gates[..., 0 * H:1 * H])
    f = jax.nn.sigmoid(gates[..., 1 * H:2 * H])
    g = jnp.tanh(gates[..., 2 * H:3 * H])
    o = jax.nn.sigmoid(gates[..., 3 * H:4 * H])
    c = f * c_s[...] + i * g
    h = o * jnp.tanh(c)
    h_s[...] = h
    c_s[...] = c
    h_out_ref[0] = h


def bilstm_sequence(gx, whh):
    T, _, B, G = gx.shape
    H = whh.shape[1]
    return pl.pallas_call(
        _bilstm_kernel,
        out_shape=jax.ShapeDtypeStruct((T, 2, B, H), jnp.float32),
        grid=(T,),
        in_specs=[
            pl.BlockSpec((1, 2, B, G), lambda t: (t, 0, 0, 0)),
            pl.BlockSpec((2, H, G), lambda t: (0, 0, 0)),
        ],
        out_specs=pl.BlockSpec((1, 2, B, H), lambda t: (t, 0, 0, 0)),
        scratch_shapes=[pltpu.VMEM((2, B, H), jnp.float32),
                        pltpu.VMEM((2, B, H), jnp.float32)],
        compiler_params=pltpu.CompilerParams(dimension_semantics=("arbitrary",)),
    )(gx, whh)


# -----------------------------------------------------------------------------
# Teacher-forced decoder: one grid step per output frame, state in VMEM scratch.
# No in-kernel concatenation (weights pre-split), attention on the MXU, and the
# mel+gate projections fused into one lane-dense (padded) output store.
# -----------------------------------------------------------------------------
def _lstm_gate_update(gates, c_prev, H):
    i = jax.nn.sigmoid(gates[:, 0 * H:1 * H])
    f = jax.nn.sigmoid(gates[:, 1 * H:2 * H])
    g = jnp.tanh(gates[:, 2 * H:3 * H])
    o = jax.nn.sigmoid(gates[:, 3 * H:4 * H])
    c = f * c_prev + i * g
    h = o * jnp.tanh(c)
    return h, c


def _decoder_kernel(gxa_ref, mem_ref, pmem_ref, mask_ref, v_ref,
                    a_wctx_ref, a_whh_ref, wq_ref,
                    d_wah_ref, d_wctx_ref, d_whh_ref, d_b_ref,
                    wp_dh_ref, wp_ctx_ref, bp_ref,
                    proj_out_ref, align_out_ref,
                    ah_s, ac_s, dh_s, dc_s, ctx_s):
    t = pl.program_id(0)

    @pl.when(t == 0)
    def _():
        ah_s[...] = jnp.zeros_like(ah_s)
        ac_s[...] = jnp.zeros_like(ac_s)
        dh_s[...] = jnp.zeros_like(dh_s)
        dc_s[...] = jnp.zeros_like(dc_s)
        ctx_s[...] = jnp.zeros_like(ctx_s)

    A = ah_s.shape[-1]
    D = dh_s.shape[-1]

    # ---- attention LSTM (prenet x-path precomputed in gxa; no concat) ----
    ctx_prev = ctx_s[:, 0, :]                                            # (B, ME)
    gates_a = (gxa_ref[0]
               + jnp.dot(ctx_prev, a_wctx_ref[...], preferred_element_type=jnp.float32)
               + jnp.dot(ah_s[...], a_whh_ref[...], preferred_element_type=jnp.float32))
    ah, ac = _lstm_gate_update(gates_a, ac_s[...], A)
    ah_s[...] = ah
    ac_s[...] = ac

    # ---- content-based attention (energies + context ride the MXU) ----
    # TODO(synk): location-sensitive conv features omitted (submodule source unavailable)
    pq = jnp.dot(ah, wq_ref[...], preferred_element_type=jnp.float32)    # (B, AT)
    e = jnp.tanh(pq[:, None, :] + pmem_ref[...])                         # (B, TT, AT)
    energies = jnp.einsum("bqa,bta->bqt", v_ref[...], e,
                          preferred_element_type=jnp.float32)            # (B, 1, TT)
    energies = energies + mask_ref[...]
    energies = energies - jnp.max(energies, axis=-1, keepdims=True)
    p = jnp.exp(energies)
    w3 = p * pl.reciprocal(jnp.sum(p, axis=-1, keepdims=True), approx=True)  # (B,1,TT)
    ctx3 = jnp.einsum("bqt,bte->bqe", w3, mem_ref[...],
                      preferred_element_type=jnp.float32)                # (B, 1, ME)
    ctx_s[...] = ctx3
    ctx = ctx_s[:, 0, :]                                                 # (B, ME)

    # ---- decoder LSTM (no concat: three dots into one accumulator) ----
    gates_d = (jnp.dot(ah, d_wah_ref[...], preferred_element_type=jnp.float32)
               + jnp.dot(ctx, d_wctx_ref[...], preferred_element_type=jnp.float32)
               + jnp.dot(dh_s[...], d_whh_ref[...], preferred_element_type=jnp.float32)
               + d_b_ref[...])
    dh, dc = _lstm_gate_update(gates_d, dc_s[...], D)
    dh_s[...] = dh
    dc_s[...] = dc

    # ---- fused mel||gate projection (lane-dense padded output) ----
    proj = (jnp.dot(dh, wp_dh_ref[...], preferred_element_type=jnp.float32)
            + jnp.dot(ctx, wp_ctx_ref[...], preferred_element_type=jnp.float32)
            + bp_ref[...])
    proj_out_ref[0] = proj
    align_out_ref[0] = w3


def run_decoder(gxa, memory, processed_memory, attn_mask3, v_b, dec_w):
    T_dec, B, GA = gxa.shape
    _, TT, ME = memory.shape
    AT = processed_memory.shape[-1]
    A = dec_w["a_whh"].shape[0]
    D = dec_w["d_whh"].shape[0]
    GD = 4 * D
    NP = dec_w["wp_dh"].shape[1]

    c2 = lambda shp: pl.BlockSpec(shp, lambda t: (0, 0))
    c3 = lambda shp: pl.BlockSpec(shp, lambda t: (0, 0, 0))

    return pl.pallas_call(
        _decoder_kernel,
        out_shape=(jax.ShapeDtypeStruct((T_dec, B, NP), jnp.float32),
                   jax.ShapeDtypeStruct((T_dec, B, 1, TT), jnp.float32)),
        grid=(T_dec,),
        in_specs=[
            pl.BlockSpec((1, B, GA), lambda t: (t, 0, 0)),
            c3((B, TT, ME)),
            c3((B, TT, AT)),
            c3((B, 1, TT)),
            c3((B, 1, AT)),
            c2((ME, GA)), c2((A, GA)), c2((A, AT)),
            c2((A, GD)), c2((ME, GD)), c2((D, GD)), c2((1, GD)),
            c2((D, NP)), c2((ME, NP)), c2((1, NP)),
        ],
        out_specs=(pl.BlockSpec((1, B, NP), lambda t: (t, 0, 0)),
                   pl.BlockSpec((1, B, 1, TT), lambda t: (t, 0, 0, 0))),
        scratch_shapes=[pltpu.VMEM((B, A), jnp.float32),
                        pltpu.VMEM((B, A), jnp.float32),
                        pltpu.VMEM((B, D), jnp.float32),
                        pltpu.VMEM((B, D), jnp.float32),
                        pltpu.VMEM((B, 1, ME), jnp.float32)],
        compiler_params=pltpu.CompilerParams(
            dimension_semantics=("arbitrary",),
            vmem_limit_bytes=48 * 1024 * 1024),
    )(gxa, memory, processed_memory, attn_mask3, v_b,
      dec_w["a_wctx"], dec_w["a_whh"], dec_w["wq"],
      dec_w["d_wah"], dec_w["d_wctx"], dec_w["d_whh"], dec_w["d_b"],
      dec_w["wp_dh"], dec_w["wp_ctx"], dec_w["bp"])


# -----------------------------------------------------------------------------
# Postnet residual add + output-length masking (parse_output), fused elementwise.
# Channels-last layout, gridded over batch.
# -----------------------------------------------------------------------------
def _residual_mask_kernel(mel_ref, post_ref, mask_ref, mel_o_ref, melp_o_ref):
    m = mask_ref[...]                       # (1, T, 1)  1.0 valid, 0.0 pad
    mel = mel_ref[...]
    mel_o_ref[...] = mel * m
    melp_o_ref[...] = (mel + post_ref[...]) * m


def residual_mask(mel_btc, post_btc, mask_bt1):
    B, T, NM = mel_btc.shape
    spec = lambda c: pl.BlockSpec((1, T, c), lambda b: (b, 0, 0))
    return pl.pallas_call(
        _residual_mask_kernel,
        out_shape=(jax.ShapeDtypeStruct((B, T, NM), jnp.float32),
                   jax.ShapeDtypeStruct((B, T, NM), jnp.float32)),
        grid=(B,),
        in_specs=[spec(NM), spec(NM), spec(1)],
        out_specs=(spec(NM), spec(NM)),
        compiler_params=pltpu.CompilerParams(dimension_semantics=("parallel",)),
    )(mel_btc, post_btc, mask_bt1)


# -----------------------------------------------------------------------------
# Parameter construction (deterministic, synthetic)
# -----------------------------------------------------------------------------
def init_params(key, cfg):
    keys = iter(jax.random.split(key, 64))

    def nrm(shape, scale=0.08):
        return scale * jax.random.normal(next(keys), shape, dtype=jnp.float32)

    n_sym, E = cfg["n_symbols"], cfg["embd_dim"]
    H = cfg["enc_lstm"]
    ME = 2 * H
    NM, P, A, AT, D = cfg["n_mel"], cfg["prenet"], cfg["attn_rnn"], cfg["attn_dim"], cfg["dec_rnn"]
    K, PC, PK = cfg["enc_k"], cfg["post_ch"], cfg["post_k"]

    std = (2.0 / (n_sym + E)) ** 0.5
    val = (3.0 ** 0.5) * std
    p = {"embedding": jax.random.uniform(next(keys), (n_sym, E),
                                         minval=-val, maxval=val, dtype=jnp.float32)}

    p["enc_convs"] = [(nrm((E, E, K)), nrm((E,))) for _ in range(3)]
    p["enc_lstm_fwd"] = (nrm((E, 4 * H)), nrm((H, 4 * H)), nrm((1, 4 * H)))
    p["enc_lstm_bwd"] = (nrm((E, 4 * H)), nrm((H, 4 * H)), nrm((1, 4 * H)))

    p["prenet_w1"], p["prenet_b1"] = nrm((NM, P)), nrm((1, P))
    p["prenet_w2"], p["prenet_b2"] = nrm((P, P)), nrm((1, P))

    p["attn_rnn_wih"], p["attn_rnn_whh"], p["attn_rnn_b"] = \
        nrm((P + ME, 4 * A)), nrm((A, 4 * A)), nrm((1, 4 * A))
    p["attn_wq"], p["attn_v"] = nrm((A, AT)), nrm((1, AT))
    p["attn_wmem"] = nrm((ME, AT))
    p["dec_rnn_wih"], p["dec_rnn_whh"], p["dec_rnn_b"] = \
        nrm((A + ME, 4 * D)), nrm((D, 4 * D)), nrm((1, 4 * D))
    p["proj_w"], p["proj_b"] = nrm((D + ME, NM)), nrm((1, NM))
    p["gate_w"], p["gate_b"] = nrm((D + ME, 1)), nrm((1, 1))

    post_shapes = [(PC, NM), (PC, PC), (PC, PC), (PC, PC), (NM, PC)]
    p["postnet"] = [(nrm((co, ci, PK)), nrm((co,))) for co, ci in post_shapes]
    return p


# -----------------------------------------------------------------------------
# Full forward (mirrors TCTRN_Tacotron.forward + parse_output)
# -----------------------------------------------------------------------------
def tctrn_tacotron_forward(params, inputs, cfg):
    text, text_lengths, mels, max_len, output_lengths = inputs
    B, TT = text.shape
    NM, T_mel = mels.shape[1], mels.shape[2]
    E = cfg["embd_dim"]
    H = cfg["enc_lstm"]
    ME = 2 * H
    AT, P, A, D = cfg["attn_dim"], cfg["prenet"], cfg["attn_rnn"], cfg["dec_rnn"]

    # ---- embedding lookup (gather; one-hot matmul removed) ----
    x = jnp.take(params["embedding"], text, axis=0)            # (B, TT, E) channels-last

    # ---- encoder conv stack (channels-last, K-tap accumulation in-kernel) ----
    # TODO(synk): batchnorm running-stat normalization + dropout omitted
    for w, b in params["enc_convs"]:
        x = conv1d(x, w, b, activation="relu")

    # ---- encoder bidirectional LSTM (input gates hoisted, fwd/bwd fused) ----
    # TODO(synk): pack_padded_sequence semantics ignored; full-length sequences assumed
    x_seq = x.transpose(1, 0, 2)                               # (TT, B, E)
    wih_f, whh_f, b_f = params["enc_lstm_fwd"]
    wih_b, whh_b, b_b = params["enc_lstm_bwd"]
    gx_f = pallas_matmul(x_seq.reshape(TT * B, E), wih_f, b_f).reshape(TT, B, 4 * H)
    gx_b = pallas_matmul(x_seq[::-1].reshape(TT * B, E), wih_b, b_b).reshape(TT, B, 4 * H)
    gx = jnp.stack([gx_f, gx_b], axis=1)                       # (TT, 2, B, 4H)
    whh = jnp.stack([whh_f, whh_b], axis=0)                    # (2, H, 4H)
    h_seq = bilstm_sequence(gx, whh)                           # (TT, 2, B, H)
    memory = jnp.concatenate([h_seq[:, 0], h_seq[:, 1][::-1]], axis=-1)   # (TT, B, ME)
    memory = memory.transpose(1, 0, 2)                         # (B, TT, ME)

    processed_memory = pallas_matmul(
        memory.reshape(B * TT, ME), params["attn_wmem"],
        jnp.zeros((1, AT), jnp.float32)).reshape(B, TT, AT)

    pos = jnp.arange(TT, dtype=jnp.int32)[None, :]
    attn_mask = jnp.where(pos < text_lengths[:, None], 0.0, -1e9).astype(jnp.float32)
    attn_mask3 = attn_mask[:, None, :]                         # (B, 1, TT)
    v_b = jnp.broadcast_to(params["attn_v"].reshape(1, 1, AT), (B, 1, AT))

    # ---- decoder inputs (teacher forcing) + prenet (big tiled matmuls) ----
    go = jnp.zeros((B, NM, 1), jnp.float32)
    dec_in = jnp.concatenate([go, mels[:, :, :-1]], axis=2).transpose(2, 0, 1)  # (T,B,NM)
    flat = dec_in.reshape(T_mel * B, NM)
    h1 = pallas_matmul(flat, params["prenet_w1"], params["prenet_b1"], "relu")
    h2 = pallas_matmul(h1, params["prenet_w2"], params["prenet_b2"], "relu")
    # TODO(synk): prenet dropout (active at inference in Tacotron2) omitted

    # attention-LSTM x-path hoisted out of the serial decoder loop
    a_wx = params["attn_rnn_wih"][:P]
    a_wctx = params["attn_rnn_wih"][P:]
    gxa = pallas_matmul(h2, a_wx, params["attn_rnn_b"]).reshape(T_mel, B, 4 * A)

    # fused mel||gate projection weights, zero-padded to a lane-dense width
    NP = _round_up(NM + 1, 128)
    wp = jnp.concatenate([params["proj_w"], params["gate_w"]], axis=1)   # (D+ME, NM+1)
    bp = jnp.concatenate([params["proj_b"], params["gate_b"]], axis=1)   # (1, NM+1)
    wp = jnp.pad(wp, ((0, 0), (0, NP - (NM + 1))))
    bp = jnp.pad(bp, ((0, 0), (0, NP - (NM + 1))))

    dec_w = dict(
        a_wctx=a_wctx, a_whh=params["attn_rnn_whh"], wq=params["attn_wq"],
        d_wah=params["dec_rnn_wih"][:A], d_wctx=params["dec_rnn_wih"][A:],
        d_whh=params["dec_rnn_whh"], d_b=params["dec_rnn_b"],
        wp_dh=wp[:D], wp_ctx=wp[D:], bp=bp)

    proj_seq, align_seq = run_decoder(gxa, memory, processed_memory,
                                      attn_mask3, v_b, dec_w)
    mel_seq = proj_seq[..., :NM]                               # (T_mel, B, NM)
    gate_outputs = proj_seq[..., NM].transpose(1, 0)           # (B, T_mel)
    alignments = align_seq[:, :, 0, :].transpose(1, 0, 2)      # (B, T_mel, TT)

    # ---- postnet (channels-last conv stack) ----
    mel_btc = mel_seq.transpose(1, 0, 2)                       # (B, T_mel, NM)
    y = mel_btc
    n_layers = len(params["postnet"])
    for i, (w, b) in enumerate(params["postnet"]):
        act = "tanh" if i < n_layers - 1 else "none"
        y = conv1d(y, w, b, activation=act)
    post_btc = y                                               # (B, T_mel, NM)

    # ---- parse_output: residual add + mask_padding ----
    tpos = jnp.arange(T_mel, dtype=jnp.int32)[None, :]
    valid = (tpos < output_lengths[:, None]).astype(jnp.float32)       # (B, T_mel)
    mel_m_btc, melp_m_btc = residual_mask(mel_btc, post_btc, valid[:, :, None])
    mel_masked = mel_m_btc.transpose(0, 2, 1)                  # (B, NM, T_mel)
    melp_masked = melp_m_btc.transpose(0, 2, 1)
    gate_masked = jnp.where(valid > 0, gate_outputs, 1000.0)

    return [mel_masked, melp_masked, gate_masked, alignments]


# -----------------------------------------------------------------------------
if __name__ == "__main__":
    cfg = dict(n_symbols=32, embd_dim=32, enc_k=5, enc_lstm=16,
               n_mel=8, prenet=32, attn_rnn=32, attn_dim=32, dec_rnn=32,
               post_ch=32, post_k=5, n_frames_per_step=1, mask_padding=True)

    root = jax.random.PRNGKey(0)
    k_param, k_text, k_mel = jax.random.split(root, 3)
    params = init_params(k_param, cfg)

    B, T_text, T_mel = 2, 8, 16
    text = jax.random.randint(k_text, (B, T_text), 0, cfg["n_symbols"], dtype=jnp.int32)
    text_lengths = jnp.array([8, 6], dtype=jnp.int32)
    mels = jax.random.normal(k_mel, (B, cfg["n_mel"], T_mel), dtype=jnp.float32)
    output_lengths = jnp.array([16, 12], dtype=jnp.int32)

    inputs = (text, text_lengths, mels, T_text, output_lengths)
    outputs = tctrn_tacotron_forward(params, inputs, cfg)
    for o in outputs:
        jax.block_until_ready(o)
    print("KERNEL_OK")
</pallas_src>

<mosaic_0001>
module attributes {stable_mosaic.version = 11 : i64} {
  func.func @_conv1d_kernel(%arg0: i32, %arg1: memref<1x12x32xbf16, #tpu.memory_space<vmem>>, %arg2: memref<5x32x32xbf16, #tpu.memory_space<vmem>>, %arg3: memref<1x32xf32, #tpu.memory_space<vmem>>, %arg4: memref<1x8x32xf32, #tpu.memory_space<vmem>>) attributes {dimension_semantics = [#tpu.dimension_semantics<parallel>], iteration_bounds = array<i64: 2>, scalar_prefetch = 0 : i64, scratch_operands = 0 : i64, tpu.core_type = #tpu.core_type<tc>, window_params = [{transform_indices = @transform_0, window_bounds = array<i64: 1, 12, 32>}, {pipeline_mode = #tpu.pipeline_mode<synchronous>, transform_indices = @transform_1, window_bounds = array<i64: 5, 32, 32>}, {pipeline_mode = #tpu.pipeline_mode<synchronous>, transform_indices = @transform_2, window_bounds = array<i64: 1, 32>}, {transform_indices = @transform_3, window_bounds = array<i64: 1, 8, 32>}]} {
    %cst = arith.constant 0.000000e+00 : f32
    %0 = vector.broadcast %cst : f32 to vector<8x32xf32>
    %c0 = arith.constant 0 : index
    %c0_0 = arith.constant 0 : index
    %c0_1 = arith.constant 0 : index
    %1 = vector.load %arg1[%c0, %c0_0, %c0_1] : memref<1x12x32xbf16, #tpu.memory_space<vmem>>, vector<1x8x32xbf16>
    %2 = vector.shape_cast %1 : vector<1x8x32xbf16> to vector<8x32xbf16>
    %c0_2 = arith.constant 0 : index
    %c0_3 = arith.constant 0 : index
    %c0_4 = arith.constant 0 : index
    %3 = vector.load %arg2[%c0_2, %c0_3, %c0_4] : memref<5x32x32xbf16, #tpu.memory_space<vmem>>, vector<1x32x32xbf16>
    %4 = vector.shape_cast %3 : vector<1x32x32xbf16> to vector<32x32xbf16>
    %cst_5 = arith.constant dense<0.000000e+00> : vector<8x32xf32>
    %5 = tpu.matmul %2, %4, %cst_5 {dimension_numbers = #tpu.dot_dimension_numbers<[1], [0], [0], [1], [0, 0, 1, 1], [], []>} : vector<8x32xbf16>, vector<32x32xbf16>, vector<8x32xf32> -> vector<8x32xf32>
    %6 = arith.addf %0, %5 : vector<8x32xf32>
    %c0_6 = arith.constant 0 : index
    %c1 = arith.constant 1 : index
    %c0_7 = arith.constant 0 : index
    %7 = vector.load %arg1[%c0_6, %c1, %c0_7] : memref<1x12x32xbf16, #tpu.memory_space<vmem>>, vector<1x8x32xbf16>
    %8 = vector.shape_cast %7 : vector<1x8x32xbf16> to vector<8x32xbf16>
    %c1_8 = arith.constant 1 : index
    %c0_9 = arith.constant 0 : index
    %c0_10 = arith.constant 0 : index
    %9 = vector.load %arg2[%c1_8, %c0_9, %c0_10] : memref<5x32x32xbf16, #tpu.memory_space<vmem>>, vector<1x32x32xbf16>
    %10 = vector.shape_cast %9 : vector<1x32x32xbf16> to vector<32x32xbf16>
    %cst_11 = arith.constant dense<0.000000e+00> : vector<8x32xf32>
    %11 = tpu.matmul %8, %10, %cst_11 {dimension_numbers = #tpu.dot_dimension_numbers<[1], [0], [0], [1], [0, 0, 1, 1], [], []>} : vector<8x32xbf16>, vector<32x32xbf16>, vector<8x32xf32> -> vector<8x32xf32>
    %12 = arith.addf %6, %11 : vector<8x32xf32>
    %c0_12 = arith.constant 0 : index
    %c2 = arith.constant 2 : index
    %c0_13 = arith.constant 0 : index
    %13 = vector.load %arg1[%c0_12, %c2, %c0_13] : memref<1x12x32xbf16, #tpu.memory_space<vmem>>, vector<1x8x32xbf16>
    %14 = vector.shape_cast %13 : vector<1x8x32xbf16> to vector<8x32xbf16>
    %c2_14 = arith.constant 2 : index
    %c0_15 = arith.constant 0 : index
    %c0_16 = arith.constant 0 : index
    %15 = vector.load %arg2[%c2_14, %c0_15, %c0_16] : memref<5x32x32xbf16, #tpu.memory_space<vmem>>, vector<1x32x32xbf16>
    %16 = vector.shape_cast %15 : vector<1x32x32xbf16> to vector<32x32xbf16>
    %cst_17 = arith.constant dense<0.000000e+00> : vector<8x32xf32>
    %17 = tpu.matmul %14, %16, %cst_17 {dimension_numbers = #tpu.dot_dimension_numbers<[1], [0], [0], [1], [0, 0, 1, 1], [], []>} : vector<8x32xbf16>, vector<32x32xbf16>, vector<8x32xf32> -> vector<8x32xf32>
    %18 = arith.addf %12, %17 : vector<8x32xf32>
    %c0_18 = arith.constant 0 : index
    %c3 = arith.constant 3 : index
    %c0_19 = arith.constant 0 : index
    %19 = vector.load %arg1[%c0_18, %c3, %c0_19] : memref<1x12x32xbf16, #tpu.memory_space<vmem>>, vector<1x8x32xbf16>
    %20 = vector.shape_cast %19 : vector<1x8x32xbf16> to vector<8x32xbf16>
    %c3_20 = arith.constant 3 : index
    %c0_21 = arith.constant 0 : index
    %c0_22 = arith.constant 0 : index
    %21 = vector.load %arg2[%c3_20, %c0_21, %c0_22] : memref<5x32x32xbf16, #tpu.memory_space<vmem>>, vector<1x32x32xbf16>
    %22 = vector.shape_cast %21 : vector<1x32x32xbf16> to vector<32x32xbf16>
    %cst_23 = arith.constant dense<0.000000e+00> : vector<8x32xf32>
    %23 = tpu.matmul %20, %22, %cst_23 {dimension_numbers = #tpu.dot_dimension_numbers<[1], [0], [0], [1], [0, 0, 1, 1], [], []>} : vector<8x32xbf16>, vector<32x32xbf16>, vector<8x32xf32> -> vector<8x32xf32>
    %24 = arith.addf %18, %23 : vector<8x32xf32>
    %c0_24 = arith.constant 0 : index
    %c4 = arith.constant 4 : index
    %c0_25 = arith.constant 0 : index
    %25 = vector.load %arg1[%c0_24, %c4, %c0_25] : memref<1x12x32xbf16, #tpu.memory_space<vmem>>, vector<1x8x32xbf16>
    %26 = vector.shape_cast %25 : vector<1x8x32xbf16> to vector<8x32xbf16>
    %c4_26 = arith.constant 4 : index
    %c0_27 = arith.constant 0 : index
    %c0_28 = arith.constant 0 : index
    %27 = vector.load %arg2[%c4_26, %c0_27, %c0_28] : memref<5x32x32xbf16, #tpu.memory_space<vmem>>, vector<1x32x32xbf16>
    %28 = vector.shape_cast %27 : vector<1x32x32xbf16> to vector<32x32xbf16>
    %cst_29 = arith.constant dense<0.000000e+00> : vector<8x32xf32>
    %29 = tpu.matmul %26, %28, %cst_29 {dimension_numbers = #tpu.dot_dimension_numbers<[1], [0], [0], [1], [0, 0, 1, 1], [], []>} : vector<8x32xbf16>, vector<32x32xbf16>, vector<8x32xf32> -> vector<8x32xf32>
    %30 = arith.addf %24, %29 : vector<8x32xf32>
    %c0_30 = arith.constant 0 : index
    %c0_31 = arith.constant 0 : index
    %31 = vector.load %arg3[%c0_30, %c0_31] : memref<1x32xf32, #tpu.memory_space<vmem>>, vector<1x32xf32>
    %32 = vector.broadcast %31 : vector<1x32xf32> to vector<8x32xf32>
    %33 = arith.addf %30, %32 : vector<8x32xf32>
    %cst_32 = arith.constant 0.000000e+00 : f32
    %34 = vector.broadcast %cst_32 : f32 to vector<8x32xf32>
    %35 = arith.maximumf %33, %34 : vector<8x32xf32>
    %c0_33 = arith.constant 0 : index
    %c0_34 = arith.constant 0 : index
    %c0_35 = arith.constant 0 : index
    %36 = vector.load %arg4[%c0_33, %c0_34, %c0_35] : memref<1x8x32xf32, #tpu.memory_space<vmem>>, vector<1x8x32xf32>
    %37 = vector.shape_cast %36 : vector<1x8x32xf32> to vector<8x32xf32>
    %38 = vector.shape_cast %35 : vector<8x32xf32> to vector<1x8x32xf32>
    tpu.vector_store %arg4[%c0_33, %c0_34, %c0_35], %38 {strides = array<i32>} : memref<1x8x32xf32, #tpu.memory_space<vmem>>, vector<1x8x32xf32>,
    return
  }
  func.func @transform_0(%arg0: i32) -> (i32, i32, i32) {
    %c0_i32 = arith.constant 0 : i32
    %c0_i32_0 = arith.constant 0 : i32
    %c0_i32_1 = arith.constant 0 : i32
    return %arg0, %c0_i32, %c0_i32_0 : i32, i32, i32
  }
  func.func @transform_1(%arg0: i32) -> (i32, i32, i32) {
    %c0_i32 = arith.constant 0 : i32
    %c0_i32_0 = arith.constant 0 : i32
    %c0_i32_1 = arith.constant 0 : i32
    %c0_i32_2 = arith.constant 0 : i32
    return %c0_i32, %c0_i32_0, %c0_i32_1 : i32, i32, i32
  }
  func.func @transform_2(%arg0: i32) -> (i32, i32) {
    %c0_i32 = arith.constant 0 : i32
    %c0_i32_0 = arith.constant 0 : i32
    %c0_i32_1 = arith.constant 0 : i32
    return %c0_i32, %c0_i32_0 : i32, i32
  }
  func.func @transform_3(%arg0: i32) -> (i32, i32, i32) {
    %c0_i32 = arith.constant 0 : i32
    %c0_i32_0 = arith.constant 0 : i32
    %c0_i32_1 = arith.constant 0 : i32
    return %arg0, %c0_i32, %c0_i32_0 : i32, i32, i32
  }
}

</mosaic_0001>

<llo_original>
// kernel: tpu_custom_call.1
$region0: #{tpu_custom_call.1}
  #allocation0 [shape = 'u32[]', space=smem, size = 0x4, offset = 0x4, fixed_abs, tag = 'smem constant byte address 0x4 - core index']
  #allocation1 [shape = 'u32[144,128]{1,0:T(1,128)}', space=vmem, size = 0x12000, scoped, tag = 'internal scratch']
  %s0 = inlined_call_operand.vmem [shape: bf16[2,12,32], index: 0, kind: input, shape index: {}]
  %s1 = inlined_call_operand.hbm [shape: bf16[5,32,32], index: 1, kind: input, shape index: {}]
  %s2 = inlined_call_operand.vmem [shape: f32[1,32], index: 2, kind: input, shape index: {}]
  %s3 = inlined_call_operand.hbm [shape: f32[2,8,32], index: 3, kind: output, shape index: {}]
  %s4 = sld [smem:[#allocation0]]
  $region49: #{tpu_custom_call.1} parent=0
    _
  %s6 = ssub.s32 1, %s4
  %s7 = scalar_select 0, %s6, %s4
  $region1: #{tpu_custom_call.1} parent=0
    #allocation2 [shape = 'u8[40960]{0}', space=vmem, size = 0xa000, scoped, tag = 'input window, operand 1, single buffered']
    #allocation3 [shape = 's32[2]{0}', space=sflag, size = 0x8, scoped, tag = 'scoped memory for tpu_custom_call.1']
    #allocation4 [shape = 's32[2]{0}', space=sflag, size = 0x8, scoped, tag = 'scoped memory for tpu_custom_call.1']
    #allocation5 [shape = 'u8[8192]{0}', space=vmem, size = 0x2000, scoped, tag = 'output window, operand 0']
    %8 = vsyncpa [#allocation3], 0
    %9 = vsyncpa [#allocation4], 0
    %s10 = scalar_lea.sflag [#allocation4], 1
    %11 = vsyncpa %s10, 0
    loop: start=0, step=1, limit=4
    $region2: #{tpu_custom_call.1} parent=1 // loop_pre_header
      _
    $region3: #{tpu_custom_call.1} parent=1 // loop_header
      %s13 = sphi 0, %s17
      %p14 = scmp.ge.s32.totalorder %s13, 4
      %s23 = sphi 0, %s25
      %s26 = sphi 0, %s23
      %s27 = sphi 0, %s26
      %s43 = sphi 0, %s27
      %s47 = sphi 0, %s47
      %s49 = sphi 0, %s47
      %s50 = sphi 0, %s49
      %s64 = sphi 0, %s50
      %s68 = sphi 0, %s68
      %s70 = sphi 0, %s68
      %s71 = sphi 0, %s70
      %s85 = sphi 0, %s71
      %s91 = sphi 0, %s93
      %s94 = sphi 0, %s91
      %s95 = sphi 0, %s94
      %s111 = sphi 0, %s95
    $region4: #{tpu_custom_call.1} parent=1 // loop_header_branch
      %16 = sbr.rel (%p14) target = $region8
    $region5: #{tpu_custom_call.1} parent=1 // loop_body
      %s18 = ssub.s32 %s13, 1
      %s19 = ssub.s32 %s13, 2
      %s20 = sadd.s32 %s13, 1
      %s21 = ssub.s32 %s13, %s20
      %p22 = scmp.eq.s32.totalorder %s21, 0
      %s24 = sadd.s32 %s23, 1
      %s25 = scalar_select %p22, %s23, %s24
      %p28 = pneg %p22
      %p29 = scmp.eq.s32.totalorder %s13, 1
      %p30 = por %p28, %p29
      %p31 = scmp.ne.s32.totalorder %s23, %s26
      %p32 = scmp.eq.s32.totalorder %s13, 0
      %p33 = por %p31, %p32
      %p34 = scmp.ne.s32.totalorder %s23, %s26
      %p35 = scmp.eq.s32.totalorder %s18, 1
      %p36 = por %p34, %p35
      %p37 = scmp.ne.s32.totalorder %s26, %s27
      %p38 = scmp.eq.s32.totalorder %s18, 0
      %p39 = por %p37, %p38
      %p40 = scmp.ne.s32.totalorder %s26, %s27
      %p41 = scmp.eq.s32.totalorder %s19, 1
      %p42 = por %p40, %p41
      %p44 = scmp.ne.s32.totalorder %s27, %s43
      %p45 = scmp.eq.s32.totalorder %s19, 0
      %p46 = por %p44, %p45
      %s48 = sadd.s32 %s47, 1
      %p51 = scmp.eq.s32.totalorder %s13, 1
      %p52 = scmp.ne.s32.totalorder %s47, %s49
      %p53 = scmp.eq.s32.totalorder %s13, 0
      %p54 = por %p52, %p53
      %p55 = scmp.ne.s32.totalorder %s47, %s49
      %p56 = scmp.eq.s32.totalorder %s18, 1
      %p57 = por %p55, %p56
      %p58 = scmp.ne.s32.totalorder %s49, %s50
      %p59 = scmp.eq.s32.totalorder %s18, 0
      %p60 = por %p58, %p59
      %p61 = scmp.ne.s32.totalorder %s49, %s50
      %p62 = scmp.eq.s32.totalorder %s19, 1
      %p63 = por %p61, %p62
      %p65 = scmp.ne.s32.totalorder %s50, %s64
      %p66 = scmp.eq.s32.totalorder %s19, 0
      %p67 = por %p65, %p66
      %s69 = sadd.s32 %s68, 1
      %p72 = scmp.eq.s32.totalorder %s13, 1
      %p73 = scmp.ne.s32.totalorder %s68, %s70
      %p74 = scmp.eq.s32.totalorder %s13, 0
      %p75 = por %p73, %p74
      %p76 = scmp.ne.s32.totalorder %s68, %s70
      %p77 = scmp.eq.s32.totalorder %s18, 1
      %p78 = por %p76, %p77
      %p79 = scmp.ne.s32.totalorder %s70, %s71
      %p80 = scmp.eq.s32.totalorder %s18, 0
      %p81 = por %p79, %p80
      %p82 = scmp.ne.s32.totalorder %s70, %s71
      %p83 = scmp.eq.s32.totalorder %s19, 1
      %p84 = por %p82, %p83
      %p86 = scmp.ne.s32.totalorder %s71, %s85
      %p87 = scmp.eq.s32.totalorder %s19, 0
      %p88 = por %p86, %p87
      %s89 = ssub.s32 %s13, %s20
      %p90 = scmp.eq.s32.totalorder %s89, 0
      %s92 = sadd.s32 %s91, 1
      %s93 = scalar_select %p90, %s91, %s92
      %p96 = pneg %p90
      %p97 = scmp.eq.s32.totalorder %s13, 1
      %p98 = por %p96, %p97
      %p99 = scmp.ne.s32.totalorder %s91, %s94
      %p100 = scmp.eq.s32.totalorder %s13, 0
      %p101 = por %p99, %p100
      %p102 = scmp.ne.s32.totalorder %s91, %s94
      %p103 = scmp.eq.s32.totalorder %s18, 1
      %p104 = por %p102, %p103
      %p105 = scmp.ne.s32.totalorder %s94, %s95
      %p106 = scmp.eq.s32.totalorder %s18, 0
      %p107 = por %p105, %p106
      %p108 = scmp.ne.s32.totalorder %s94, %s95
      %p109 = scmp.eq.s32.totalorder %s19, 1
      %p110 = por %p108, %p109
      %p112 = scmp.ne.s32.totalorder %s95, %s111
      %p113 = scmp.eq.s32.totalorder %s19, 0
      %p114 = por %p112, %p113
      %p115 = scmp.le.s32.totalorder 1, %s13
      %p116 = scmp.lt.s32.totalorder %s13, 3
      %p117 = pnand %p115, %p116
      %p118 = pneg %p117
      // Predicated region
      $region9: #{tpu_custom_call.1} parent=5 // pred_check
        _
      $region10: #{tpu_custom_call.1} parent=5 // pred_check_branch
        %120 = sbr.rel (%p117) target = $region12
      $region11: #{tpu_custom_call.1} parent=5 // pred_region
        %s121 = ssub.s32 %s13, 1
        // Predicated region
        $region13: #{tpu_custom_call.1} parent=11 // pred_check
          %p122 = pneg %p60
        $region14: #{tpu_custom_call.1} parent=11 // pred_check_branch
          %124 = sbr.rel (%p122) target = $region16
        $region15: #{tpu_custom_call.1} parent=11 // pred_region
          %s126 = ssub.s32 1280, 1280
          %127 = vsyncadd [#allocation3], %s126
          %s128 = sshll.u32 [#allocation2], 4
          %s129 = int_to_ptr.vmem [resolvable:$true] %s128
          %134 = dma.hbm_to_vmem [thread:$0]  %s1, 1280, %s129, [#allocation3], 64, 64, 4
        $region16: #{tpu_custom_call.1} parent=11 // pred_fallthru
          _
        // Predicated region
        $region17: #{tpu_custom_call.1} parent=11 // pred_check
          %p135 = pneg %p81
        $region18: #{tpu_custom_call.1} parent=11 // pred_check_branch
          %137 = sbr.rel (%p135) target = $region20
        $region19: #{tpu_custom_call.1} parent=11 // pred_region
          _
        $region20: #{tpu_custom_call.1} parent=11 // pred_fallthru
          _
      $region12: #{tpu_custom_call.1} parent=5 // pred_fallthru
        _
      %p138 = scmp.lt.s32.totalorder %s13, 2
      // Predicated region
      $region21: #{tpu_custom_call.1} parent=5 // pred_check
        %p139 = pneg %p138
      $region22: #{tpu_custom_call.1} parent=5 // pred_check_branch
        %141 = sbr.rel (%p139) target = $region24
      $region23: #{tpu_custom_call.1} parent=5 // pred_region
        // Predicated region
        $region25: #{tpu_custom_call.1} parent=23 // pred_check
          %p142 = pneg %p33
        $region26: #{tpu_custom_call.1} parent=23 // pred_check_branch
          %144 = sbr.rel (%p142) target = $region28
        $region27: #{tpu_custom_call.1} parent=23 // pred_region
          %p145 = scmp.lt.s32.totalorder %s13, 1
          %s146 = scalar_select %p145, %s13, 1
          %s147 = smul.addr %s146, 2
          %s148 = smul.addr %s147, 4
          %s149 = scalar_lea.vmem %s0, %s148
        $region28: #{tpu_custom_call.1} parent=23 // pred_fallthru
          _
      $region24: #{tpu_custom_call.1} parent=5 // pred_fallthru
        _
      %p150 = scmp.le.s32.totalorder 1, %s13
      %p151 = scmp.lt.s32.totalorder %s13, 3
      %p152 = pnand %p150, %p151
      %p153 = pneg %p152
      // Predicated region
      $region29: #{tpu_custom_call.1} parent=5 // pred_check
        _
      $region30: #{tpu_custom_call.1} parent=5 // pred_check_branch
        %155 = sbr.rel (%p152) target = $region32
      $region31: #{tpu_custom_call.1} parent=5 // pred_region
        %s156 = ssub.s32 %s13, 1
        // Predicated region
        $region33: #{tpu_custom_call.1} parent=31 // pred_check
          %p157 = pneg %p60
        $region34: #{tpu_custom_call.1} parent=31 // pred_check_branch
          %159 = sbr.rel (%p157) target = $region36
        $region35: #{tpu_custom_call.1} parent=31 // pred_region
          %160 = dma.done [#allocation3], 1280
        $region36: #{tpu_custom_call.1} parent=31 // pred_fallthru
          _
        %p161 = scmp.lt.s32.totalorder %s18, 1
        %s162 = scalar_select %p161, %s18, 1
        %s163 = smul.addr %s162, 2
        %s164 = smul.addr %s163, 4
        %s165 = scalar_lea.vmem %s0, %s164
        %p166 = pneg %p39
        %p167 = pneg %p36
        %p168 = pneg %p60
        %p169 = pneg %p57
        %p170 = pneg %p81
        %p171 = pneg %p78
        %p172 = pneg %p107
        %p173 = pneg %p104
        %s174 = sand.u32 %s94, 1
        %s175 = scalar_lea.sflag [#allocation4], %s174
        %s176 = sand.u32 %s94, 1
        %s177 = smul.addr %s176, 8
        %s178 = scalar_lea.vmem [#allocation5], %s177
        %p179 = scmp.lt.s32.totalorder %s18, 1
        %s180 = scalar_select %p179, %s18, 1
        %s181 = smul.addr %s180, 2
        %s182 = smul.addr %s181, 4
        %s183 = scalar_lea.vmem %s0, %s182
        %v185 = vld [vmem:[%s183] sm:$0xf]
        %v186 = vld [vmem:[#allocation2] sm:$0xf]
        %v187 = vld [vmem:[#allocation2 + $0x4] sm:$0xf]
        %v188 = vld [vmem:[#allocation2 + $0x8] sm:$0xf]
        %v189 = vld [vmem:[#allocation2 + $0xc] sm:$0xf]
        %v190 = vld [vmem:[%s183 + $0x4] sm:$0x1]
        %s191 = scalar_lea.vmem [#allocation2], 16
        %v192 = vld [vmem:[%s191] sm:$0xf]
        %v193 = vld [vmem:[%s191 + $0x4] sm:$0xf]
        %v194 = vld [vmem:[%s191 + $0x8] sm:$0xf]
        %v195 = vld [vmem:[%s191 + $0xc] sm:$0xf]
        %v198 = vunpack.c.l.b16 %v185
        %v199 = vunpack.c.l.b16 %v190
        %v200 = vpack.c.b16 %v199, %v198
        %v202 = vshrl.u32 %v200, 16
        %v204 = vshll.u32 %v200, 16
        %v206 = vrot.slane %v204, 1
        %v207 = vor.u32 %v202, %v206
        %v212 = vunpack.c.l.b16 %v192
        %v213 = vunpack.c.l.b16 %v193
        %v214 = vunpack.c.l.b16 %v194
        %v215 = vunpack.c.l.b16 %v195
        %v216 = vpack.c.b16 %v213, %v212
        %v217 = vpack.c.b16 %v215, %v214
        %vm220 = vcmask 261120
        %v222 = vsel %vm220, %v207, 0
        %224 = vmatprep.subr.bf16.mxu0 0
        %225 = vmatpush1.bf16.msra.mxu0 %v216
        %226 = vmatprep.subr.bf16.mxu0 0
        %227 = vmatpush1.bf16.msra.mxu0 %v217
        %228 = vmatprep.subr.bf16.mxu0 0
        %229 = vmatpush1.bf16.msra.mxu0 0
        %230 = vmatprep.subr.bf16.mxu0 0
        %231 = vmatpush1.bf16.msra.mxu0 0
        %232 = vmatprep.subr.bf16.mxu0 0
        %233 = vmatpush1.bf16.msra.mxu0 0
        %234 = vmatprep.subr.bf16.mxu0 0
        %235 = vmatpush1.bf16.msra.mxu0 0
        %236 = vmatprep.subr.bf16.mxu0 0
        %237 = vmatpush1.bf16.msra.mxu0 0
        %238 = vmatprep.subr.bf16.mxu0 0
        %239 = vmatpush1.bf16.msra.mxu0 0
        %240 = vmatprep.subr.bf16.mxu0 0
        %241 = vmatpush1.bf16.msra.mxu0 0
        %242 = vmatprep.subr.bf16.mxu0 0
        %243 = vmatpush1.bf16.msra.mxu0 0
        %244 = vmatprep.subr.bf16.mxu0 0
        %245 = vmatpush1.bf16.msra.mxu0 0
        %246 = vmatprep.subr.bf16.mxu0 0
        %247 = vmatpush1.bf16.msra.mxu0 0
        %248 = vmatprep.subr.bf16.mxu0 0
        %249 = vmatpush1.bf16.msra.mxu0 0
        %250 = vmatprep.subr.bf16.mxu0 0
        %251 = vmatpush1.bf16.msra.mxu0 0
        %252 = vmatprep.subr.bf16.mxu0 0
        %253 = vmatpush1.bf16.msra.mxu0 0
        %254 = vmatprep.subr.bf16.mxu0 0
        %255 = vmatpush1.bf16.msra.mxu0 0
        %256 = vmatprep.mubr.bf16.mxu0 0
        %257 = vmatmul.mubr.bf16.gmra.mrb[0].mxu0 %v222
        %v258 = vpop.f32.mrb[0].mxu0
        %v259 = vadd.f32 0.0, %v258
        %v260 = vpop.f32.mrb[0].mxu0
        %v261 = vpop.f32.mrb[0].mxu0
        %v262 = vpop.f32.mrb[0].mxu0
        %263 = vdwg.mxu0
        %v268 = vunpack.c.l.b16 %v186
        %v269 = vunpack.c.l.b16 %v187
        %v270 = vunpack.c.l.b16 %v188
        %v271 = vunpack.c.l.b16 %v189
        %v272 = vpack.c.b16 %v269, %v268
        %v273 = vpack.c.b16 %v271, %v270
        %v277 = vsel %vm220, %v185, 0
        %279 = vmatprep.subr.bf16.mxu0 0
        %280 = vmatpush1.bf16.msra.mxu0 %v272
        %281 = vmatprep.subr.bf16.mxu0 0
        %282 = vmatpush1.bf16.msra.mxu0 %v273
        %283 = vmatprep.subr.bf16.mxu0 0
        %284 = vmatpush1.bf16.msra.mxu0 0
        %285 = vmatprep.subr.bf16.mxu0 0
        %286 = vmatpush1.bf16.msra.mxu0 0
        %287 = vmatprep.subr.bf16.mxu0 0
        %288 = vmatpush1.bf16.msra.mxu0 0
        %289 = vmatprep.subr.bf16.mxu0 0
        %290 = vmatpush1.bf16.msra.mxu0 0
        %291 = vmatprep.subr.bf16.mxu0 0
        %292 = vmatpush1.bf16.msra.mxu0 0
        %293 = vmatprep.subr.bf16.mxu0 0
        %294 = vmatpush1.bf16.msra.mxu0 0
        %295 = vmatprep.subr.bf16.mxu0 0
        %296 = vmatpush1.bf16.msra.mxu0 0
        %297 = vmatprep.subr.bf16.mxu0 0
        %298 = vmatpush1.bf16.msra.mxu0 0
        %299 = vmatprep.subr.bf16.mxu0 0
        %300 = vmatpush1.bf16.msra.mxu0 0
        %301 = vmatprep.subr.bf16.mxu0 0
        %302 = vmatpush1.bf16.msra.mxu0 0
        %303 = vmatprep.subr.bf16.mxu0 0
        %304 = vmatpush1.bf16.msra.mxu0 0
        %305 = vmatprep.subr.bf16.mxu0 0
        %306 = vmatpush1.bf16.msra.mxu0 0
        %307 = vmatprep.subr.bf16.mxu0 0
        %308 = vmatpush1.bf16.msra.mxu0 0
        %309 = vmatprep.subr.bf16.mxu0 0
        %310 = vmatpush1.bf16.msra.mxu0 0
        %311 = vmatprep.mubr.bf16.mxu0 0
        %312 = vmatmul.mubr.bf16.gmra.mrb[0].mxu0 %v277
        %v313 = vpop.f32.mrb[0].mxu0
        %v314 = vadd.f32 %v259, %v313
        %v315 = vpop.f32.mrb[0].mxu0
        %v316 = vpop.f32.mrb[0].mxu0
        %v317 = vpop.f32.mrb[0].mxu0
        %318 = vdwg.mxu0
        %v319 = vld [vmem:[%s183] sm:$0xe]
        %s320 = scalar_lea.vmem [#allocation2], 32
        %v321 = vld [vmem:[%s320] sm:$0xf]
        %v322 = vld [vmem:[%s320 + $0x4] sm:$0xf]
        %v323 = vld [vmem:[%s320 + $0x8] sm:$0xf]
        %v324 = vld [vmem:[%s320 + $0xc] sm:$0xf]
        %v326 = vunpack.c.l.b16 %v319
        %v327 = vpack.c.b16 %v199, %v326
        %v328 = vrot.slane %v327, 1
        %v333 = vunpack.c.l.b16 %v321
        %v334 = vunpack.c.l.b16 %v322
        %v335 = vunpack.c.l.b16 %v323
        %v336 = vunpack.c.l.b16 %v324
        %v337 = vpack.c.b16 %v334, %v333
        %v338 = vpack.c.b16 %v336, %v335
        %v342 = vsel %vm220, %v328, 0
        %344 = vmatprep.subr.bf16.mxu0 0
        %345 = vmatpush1.bf16.msra.mxu0 %v337
        %346 = vmatprep.subr.bf16.mxu0 0
        %347 = vmatpush1.bf16.msra.mxu0 %v338
        %348 = vmatprep.subr.bf16.mxu0 0
        %349 = vmatpush1.bf16.msra.mxu0 0
        %350 = vmatprep.subr.bf16.mxu0 0
        %351 = vmatpush1.bf16.msra.mxu0 0
        %352 = vmatprep.subr.bf16.mxu0 0
        %353 = vmatpush1.bf16.msra.mxu0 0
        %354 = vmatprep.subr.bf16.mxu0 0
        %355 = vmatpush1.bf16.msra.mxu0 0
        %356 = vmatprep.subr.bf16.mxu0 0
        %357 = vmatpush1.bf16.msra.mxu0 0
        %358 = vmatprep.subr.bf16.mxu0 0
        %359 = vmatpush1.bf16.msra.mxu0 0
        %360 = vmatprep.subr.bf16.mxu0 0
        %361 = vmatpush1.bf16.msra.mxu0 0
        %362 = vmatprep.subr.bf16.mxu0 0
        %363 = vmatpush1.bf16.msra.mxu0 0
        %364 = vmatprep.subr.bf16.mxu0 0
        %365 = vmatpush1.bf16.msra.mxu0 0
        %366 = vmatprep.subr.bf16.mxu0 0
        %367 = vmatpush1.bf16.msra.mxu0 0
        %368 = vmatprep.subr.bf16.mxu0 0
        %369 = vmatpush1.bf16.msra.mxu0 0
        %370 = vmatprep.subr.bf16.mxu0 0
        %371 = vmatpush1.bf16.msra.mxu0 0
        %372 = vmatprep.subr.bf16.mxu0 0
        %373 = vmatpush1.bf16.msra.mxu0 0
        %374 = vmatprep.subr.bf16.mxu0 0
        %375 = vmatpush1.bf16.msra.mxu0 0
        %376 = vmatprep.mubr.bf16.mxu0 0
        %377 = vmatmul.mubr.bf16.gmra.mrb[0].mxu0 %v342
        %v378 = vpop.f32.mrb[0].mxu0
        %v379 = vadd.f32 0.0, %v378
        %v380 = vpop.f32.mrb[0].mxu0
        %v381 = vpop.f32.mrb[0].mxu0
        %v382 = vpop.f32.mrb[0].mxu0
        %383 = vdwg.mxu0
        %v384 = vadd.f32 %v314, %v379
        %v385 = vld [vmem:[%s183 + $0x4] sm:$0x3]
        %s386 = scalar_lea.vmem [#allocation2], 48
        %v387 = vld [vmem:[%s386] sm:$0xf]
        %v388 = vld [vmem:[%s386 + $0x4] sm:$0xf]
        %v389 = vld [vmem:[%s386 + $0x8] sm:$0xf]
        %v390 = vld [vmem:[%s386 + $0xc] sm:$0xf]
        %v392 = vunpack.c.l.b16 %v385
        %v393 = vpack.c.b16 %v392, %v326
        %v395 = vshrl.u32 %v393, 16
        %v397 = vrot.slane %v395, 1
        %v398 = vshll.u32 %v393, 16
        %v400 = vrot.slane %v398, 2
        %v401 = vor.u32 %v397, %v400
        %v406 = vunpack.c.l.b16 %v387
        %v407 = vunpack.c.l.b16 %v388
        %v408 = vunpack.c.l.b16 %v389
        %v409 = vunpack.c.l.b16 %v390
        %v410 = vpack.c.b16 %v407, %v406
        %v411 = vpack.c.b16 %v409, %v408
        %v415 = vsel %vm220, %v401, 0
        %417 = vmatprep.subr.bf16.mxu0 0
        %418 = vmatpush1.bf16.msra.mxu0 %v410
        %419 = vmatprep.subr.bf16.mxu0 0
        %420 = vmatpush1.bf16.msra.mxu0 %v411
        %421 = vmatprep.subr.bf16.mxu0 0
        %422 = vmatpush1.bf16.msra.mxu0 0
        %423 = vmatprep.subr.bf16.mxu0 0
        %424 = vmatpush1.bf16.msra.mxu0 0
        %425 = vmatprep.subr.bf16.mxu0 0
        %426 = vmatpush1.bf16.msra.mxu0 0
        %427 = vmatprep.subr.bf16.mxu0 0
        %428 = vmatpush1.bf16.msra.mxu0 0
        %429 = vmatprep.subr.bf16.mxu0 0
        %430 = vmatpush1.bf16.msra.mxu0 0
        %431 = vmatprep.subr.bf16.mxu0 0
        %432 = vmatpush1.bf16.msra.mxu0 0
        %433 = vmatprep.subr.bf16.mxu0 0
        %434 = vmatpush1.bf16.msra.mxu0 0
        %435 = vmatprep.subr.bf16.mxu0 0
        %436 = vmatpush1.bf16.msra.mxu0 0
        %437 = vmatprep.subr.bf16.mxu0 0
        %438 = vmatpush1.bf16.msra.mxu0 0
        %439 = vmatprep.subr.bf16.mxu0 0
        %440 = vmatpush1.bf16.msra.mxu0 0
        %441 = vmatprep.subr.bf16.mxu0 0
        %442 = vmatpush1.bf16.msra.mxu0 0
        %443 = vmatprep.subr.bf16.mxu0 0
        %444 = vmatpush1.bf16.msra.mxu0 0
        %445 = vmatprep.subr.bf16.mxu0 0
        %446 = vmatpush1.bf16.msra.mxu0 0
        %447 = vmatprep.subr.bf16.mxu0 0
        %448 = vmatpush1.bf16.msra.mxu0 0
        %449 = vmatprep.mubr.bf16.mxu0 0
        %450 = vmatmul.mubr.bf16.gmra.mrb[0].mxu0 %v415
        %v451 = vpop.f32.mrb[0].mxu0
        %v452 = vadd.f32 0.0, %v451
        %v453 = vpop.f32.mrb[0].mxu0
        %v454 = vpop.f32.mrb[0].mxu0
        %v455 = vpop.f32.mrb[0].mxu0
        %456 = vdwg.mxu0
        %v457 = vadd.f32 %v384, %v452
        %v458 = vld [vmem:[%s183] sm:$0xc]
        %s459 = scalar_lea.vmem [#allocation2], 64
        %v460 = vld [vmem:[%s459] sm:$0xf]
        %v461 = vld [vmem:[%s459 + $0x4] sm:$0xf]
        %v462 = vld [vmem:[%s459 + $0x8] sm:$0xf]
        %v463 = vld [vmem:[%s459 + $0xc] sm:$0xf]
        %v465 = vunpack.c.l.b16 %v458
        %v466 = vpack.c.b16 %v392, %v465
        %v467 = vrot.slane %v466, 2
        %v472 = vunpack.c.l.b16 %v460
        %v473 = vunpack.c.l.b16 %v461
        %v474 = vunpack.c.l.b16 %v462
        %v475 = vunpack.c.l.b16 %v463
        %v476 = vpack.c.b16 %v473, %v472
        %v477 = vpack.c.b16 %v475, %v474
        %v481 = vsel %vm220, %v467, 0
        %483 = vmatprep.subr.bf16.mxu0 0
        %484 = vmatpush1.bf16.msra.mxu0 %v476
        %485 = vmatprep.subr.bf16.mxu0 0
        %486 = vmatpush1.bf16.msra.mxu0 %v477
        %487 = vmatprep.subr.bf16.mxu0 0
        %488 = vmatpush1.bf16.msra.mxu0 0
        %489 = vmatprep.subr.bf16.mxu0 0
        %490 = vmatpush1.bf16.msra.mxu0 0
        %491 = vmatprep.subr.bf16.mxu0 0
        %492 = vmatpush1.bf16.msra.mxu0 0
        %493 = vmatprep.subr.bf16.mxu0 0
        %494 = vmatpush1.bf16.msra.mxu0 0
        %495 = vmatprep.subr.bf16.mxu0 0
        %496 = vmatpush1.bf16.msra.mxu0 0
        %497 = vmatprep.subr.bf16.mxu0 0
        %498 = vmatpush1.bf16.msra.mxu0 0
        %499 = vmatprep.subr.bf16.mxu0 0
        %500 = vmatpush1.bf16.msra.mxu0 0
        %501 = vmatprep.subr.bf16.mxu0 0
        %502 = vmatpush1.bf16.msra.mxu0 0
        %503 = vmatprep.subr.bf16.mxu0 0
        %504 = vmatpush1.bf16.msra.mxu0 0
        %505 = vmatprep.subr.bf16.mxu0 0
        %506 = vmatpush1.bf16.msra.mxu0 0
        %507 = vmatprep.subr.bf16.mxu0 0
        %508 = vmatpush1.bf16.msra.mxu0 0
        %509 = vmatprep.subr.bf16.mxu0 0
        %510 = vmatpush1.bf16.msra.mxu0 0
        %511 = vmatprep.subr.bf16.mxu0 0
        %512 = vmatpush1.bf16.msra.mxu0 0
        %513 = vmatprep.subr.bf16.mxu0 0
        %514 = vmatpush1.bf16.msra.mxu0 0
        %515 = vmatprep.mubr.bf16.mxu0 0
        %516 = vmatmul.mubr.bf16.gmra.mrb[0].mxu0 %v481
        %v517 = vpop.f32.mrb[0].mxu0
        %v518 = vadd.f32 0.0, %v517
        %v519 = vpop.f32.mrb[0].mxu0
        %v520 = vpop.f32.mrb[0].mxu0
        %v521 = vpop.f32.mrb[0].mxu0
        %522 = vdwg.mxu0
        %v523 = vadd.f32 %v457, %v518
        %v524 = vld [vmem:[%s2] sm:$0x1]
        %v526 = vlaneseq
        %v527 = vshrl.u32 %v526, 7
        %v528 = vsub.s32 0, %v527
        %v529 = vrot.slane %v524, %v528
        %v531 = vadd.f32 %v523, %v529
        %v532 = vmax.f32 %v531, 0.0
        %533 = vst.msk [vmem:[%s178] sm:$0xff] %vm220, %v532
        %s534 = sand.u32 %s94, 1
        %s535 = scalar_lea.sflag [#allocation4], %s534
        %s536 = sand.u32 %s94, 1
        %s537 = smul.addr %s536, 8
        %s538 = scalar_lea.vmem [#allocation5], %s537
        // Predicated region
        $region37: #{tpu_custom_call.1} parent=31 // pred_check
          %p539 = pneg %p104
        $region38: #{tpu_custom_call.1} parent=31 // pred_check_branch
          %541 = sbr.rel (%p539) target = $region40
        $region39: #{tpu_custom_call.1} parent=31 // pred_region
          %s543 = ssub.s32 128, 128
          %544 = vsyncadd %s535, %s543
          %s545 = smul.addr %s18, 128
          %s546 = scalar_lea.hbm %s3, %s545
          %s548 = sshll.u32 %s538, 4
          %s549 = int_to_ptr.vmem [resolvable:$true] %s548
          %551 = dma.vmem_to_hbm [thread:$0]  %s549, 128, %s546, %s535
        $region40: #{tpu_custom_call.1} parent=31 // pred_fallthru
          _
      $region32: #{tpu_custom_call.1} parent=5 // pred_fallthru
        _
      %p552 = scmp.le.s32.totalorder 2, %s13
      // Predicated region
      $region41: #{tpu_custom_call.1} parent=5 // pred_check
        %p553 = pneg %p552
      $region42: #{tpu_custom_call.1} parent=5 // pred_check_branch
        %555 = sbr.rel (%p553) target = $region44
      $region43: #{tpu_custom_call.1} parent=5 // pred_region
        %s556 = ssub.s32 %s13, 2
        // Predicated region
        $region45: #{tpu_custom_call.1} parent=43 // pred_check
          %p557 = pneg %p110
        $region46: #{tpu_custom_call.1} parent=43 // pred_check_branch
          %559 = sbr.rel (%p557) target = $region48
        $region47: #{tpu_custom_call.1} parent=43 // pred_region
          %s560 = sand.u32 %s95, 1
          %s561 = scalar_lea.sflag [#allocation4], %s560
          %s562 = sand.u32 %s95, 1
          %s563 = smul.addr %s562, 8
          %s564 = scalar_lea.vmem [#allocation5], %s563
          %565 = dma.done %s561, 128
        $region48: #{tpu_custom_call.1} parent=43 // pred_fallthru
          _
      $region44: #{tpu_custom_call.1} parent=5 // pred_fallthru
        _
    $region6: #{tpu_custom_call.1} parent=1 // loop_footer
      %s17 = sadd.s32 1, %s13
    $region7: #{tpu_custom_call.1} parent=1 // loop_footer_branch
      %12 = sbr.rel target = $region3
    $region8: #{tpu_custom_call.1} parent=1 // loop_exit
      _
    %566 = vsyncpa [#allocation3], 1
    %s567 = scalar_lea.sflag [#allocation3], 1
    %568 = vsyncpa %s567, 1
    %569 = vsyncpa [#allocation4], 1
    %s570 = scalar_lea.sflag [#allocation4], 1
    %571 = vsyncpa %s570, 1

</llo_original>
